<compile_context>
chip_gen: v7x
topology: tpu7x:2x2x1
jax: 0.10.0
libtpu: 0.0.40
codegen_flags: <defaults>
</compile_context>

<pallas_src>
from functools import partial

import jax
import jax.numpy as jnp
from jax.experimental import pallas as pl
from jax.experimental.pallas import tpu as pltpu


def _atom_encoder_kernel(xin_ref, sel_ref, lanes_ref, t2_ref, wadd_ref, out_ref):
    """One row tile: out = onehot(ids) @ T2(+bias) + x_add @ Wadd (folded layout).

    xin   : (rows, k_in) f32, k_in = fold*(num_cat + add_eff), [ids | x_add]
    sel   : (k_in, k2)   0/1 selector; rows past the id columns are zero
    lanes : (1, k2)      f32, lanes[l] = l % vpad
    t2    : (k2, out_w)  block-diag (tables @ W_emb) with bias folded in
    wadd  : (k_in, out_w) block-diag continuous weights; id rows are zero
    """
    xin = xin_ref[...]
    # Expand id columns into vpad-wide lane groups via one tiny MXU pass:
    #   ids_exp[n, c*vpad + v] = ids[n, c]   (exact: 0/1 weights, small ints).
    ids_exp = jnp.dot(xin, sel_ref[...], preferred_element_type=jnp.float32)
    # Fused one-hot over all categorical features: oh[n, c*vpad + v] = (id == v).
    one_hot = (ids_exp == lanes_ref[...]).astype(t2_ref.dtype)
    # Single MXU pass against the pre-fused (tables @ W_emb + bias) table plus
    # the continuous-feature half of the Linear (zero rows over the id columns).
    out = jnp.dot(one_hot, t2_ref[...], preferred_element_type=jnp.float32)
    out = out + jnp.dot(xin.astype(wadd_ref.dtype), wadd_ref[...],
                        preferred_element_type=jnp.float32)
    out_ref[...] = out.astype(out_ref.dtype)


def _block_diag(m, fold):
    """(k, e) -> (fold*k, fold*e) block-diagonal replication of m."""
    if fold == 1:
        return m
    k, e = m.shape
    eye = jnp.eye(fold, dtype=m.dtype)
    return jnp.einsum('ij,ke->ikje', eye, m).reshape(fold * k, fold * e)


@partial(jax.jit, static_argnames=("num_cat", "add_dim", "emb_dim", "row_block",
                                   "lane_width", "use_bf16"))
def atom_encoder(x, tables, w, b, *, num_cat, add_dim, emb_dim,
                 row_block=512, lane_width=128, use_bf16=False):
    """x: (N, num_cat+add_dim) f32 (id columns hold integer values);
    tables: (num_cat, vpad, emb_dim) zero-padded embedding tables;
    w: (emb_dim+add_dim, emb_dim) so y = x @ w + b;  b: (1, emb_dim).
    Returns (N, emb_dim) f32."""
    assert num_cat >= 1
    n = x.shape[0]
    vpad = tables.shape[1]

    # PyTorch .long() truncation once, then ship ids as f32 in the fused input.
    ids = x[:, :num_cat].astype(jnp.int32).astype(jnp.float32)
    if add_dim > 0:
        x_add = x[:, num_cat:num_cat + add_dim]
        w_emb, w_add, b_eff = w[:emb_dim, :], w[emb_dim:, :], b.reshape(1, emb_dim)
        add_eff = add_dim
    else:
        # No Linear: output is just the embedding sum -> fuse with identity.
        x_add = jnp.zeros((n, 1), jnp.float32)
        w_emb = jnp.eye(emb_dim, dtype=jnp.float32)
        w_add = jnp.zeros((1, emb_dim), jnp.float32)
        b_eff = jnp.zeros((1, emb_dim), jnp.float32)
        add_eff = 1

    # Fuse tables with the Linear's embedding half once (tiny constant) and
    # fold the bias into the first categorical feature's vocab block: every
    # row gets exactly one one-hot hit there, so the bias is added exactly once.
    t2 = jnp.dot(tables.reshape(num_cat * vpad, emb_dim), w_emb,
                 precision=jax.lax.Precision.HIGHEST)       # (num_cat*vpad, emb)
    t2 = t2.at[:vpad, :].add(b_eff)

    # Fold `fold` consecutive atom rows into one kernel row so the output block
    # is lane_width lanes wide (dense unmasked stores); guard the one-hot width
    # for large-vocab configs so intermediates stay small.
    fold = lane_width // emb_dim if (emb_dim <= lane_width
                                     and lane_width % emb_dim == 0) else 1
    while fold > 1 and fold * num_cat * vpad > 2048:
        fold //= 2

    k_ids = fold * num_cat
    k_add = fold * add_eff
    k_in = k_ids + k_add
    k2 = fold * num_cat * vpad
    out_w = fold * emb_dim

    # Row-tile sizing: cap per-tile VMEM (~4 MiB for the one-hot / output) and
    # collapse tiny inputs to a single grid step.
    max_rb = max(8, (4 * 1024 * 1024) // (4 * max(k2, out_w)) // 8 * 8)
    rb = max(8, min(row_block, max_rb) // 8 * 8)
    n4_needed = pl.cdiv(n, fold)
    rb = min(rb, pl.cdiv(n4_needed, 8) * 8)
    grid_n = pl.cdiv(n4_needed, rb)
    n4 = grid_n * rb
    n_pad = n4 * fold

    ids = jnp.pad(ids, ((0, n_pad - n), (0, 0)))             # id 0 is a valid row
    x_add = jnp.pad(x_add, ((0, n_pad - n), (0, 0)))
    # Single fused per-row input: [folded ids | folded x_add].
    xin = jnp.concatenate([ids.reshape(n4, k_ids),
                           x_add.reshape(n4, k_add)], axis=1)

    # Grid-invariant constants (resident in VMEM, built once in the wrapper):
    col = jnp.arange(k2)
    sel = jnp.zeros((k_in, k2), jnp.float32).at[:k_ids, :].set(
        (jnp.arange(k_ids)[:, None] == (col[None, :] // vpad)).astype(jnp.float32))
    lane_mod = (col % vpad).astype(jnp.float32).reshape(1, k2)
    cdtype = jnp.bfloat16 if use_bf16 else jnp.float32
    t2_blk = _block_diag(t2, fold).astype(cdtype)             # (k2, out_w)
    wadd_blk = jnp.zeros((k_in, out_w), jnp.float32).at[k_ids:, :].set(
        _block_diag(w_add, fold)).astype(cdtype)              # (k_in, out_w)

    flops = 2 * n4 * (k_in * k2 + k2 * out_w + k_in * out_w)
    bytes_accessed = 4 * (xin.size + n4 * out_w + sel.size + lane_mod.size) \
        + t2_blk.dtype.itemsize * t2_blk.size + wadd_blk.dtype.itemsize * wadd_blk.size

    out4 = pl.pallas_call(
        _atom_encoder_kernel,
        out_shape=jax.ShapeDtypeStruct((n4, out_w), jnp.float32),
        grid=(grid_n,),
        in_specs=[
            pl.BlockSpec((rb, k_in), lambda i: (i, 0)),       # fused per-row input
            pl.BlockSpec(sel.shape, lambda i: (0, 0)),        # resident constants
            pl.BlockSpec(lane_mod.shape, lambda i: (0, 0)),
            pl.BlockSpec(t2_blk.shape, lambda i: (0, 0)),
            pl.BlockSpec(wadd_blk.shape, lambda i: (0, 0)),
        ],
        out_specs=pl.BlockSpec((rb, out_w), lambda i: (i, 0)),
        compiler_params=pltpu.CompilerParams(
            dimension_semantics=("parallel",),   # shard row tiles across TCs (v7x)
            vmem_limit_bytes=32 * 1024 * 1024),
        cost_estimate=pl.CostEstimate(flops=flops, transcendentals=0,
                                      bytes_accessed=bytes_accessed),
    )(xin, sel, lane_mod, t2_blk, wadd_blk)

    # (n4, fold*emb) row-major == (n_pad, emb): free reinterpretation.
    return out4.reshape(n_pad, emb_dim)[:n]


def reference_forward(x, tables_list, w, b, *, num_cat, add_dim):
    """Plain-JAX replica of the PyTorch forward for verification."""
    emb = 0
    for i, t in enumerate(tables_list):
        ids = x[:, i].astype(jnp.int32)
        emb = emb + t[ids]
    if add_dim > 0:
        cat = jnp.concatenate([emb, x[:, num_cat:]], axis=1)
        emb = cat @ w + b[0]
    return emb


if __name__ == "__main__":
    key = jax.random.PRNGKey(0)

    # Module configuration (small, consistent with AtomEncoder.__init__).
    emb_dim = 32
    cat_dims = (5, 7, 3)          # feature_dims[0]
    cont_dim = 4                  # feature_dims[1]
    sigma_embed_dim = 2
    num_cat = len(cat_dims)
    add_dim = cont_dim + sigma_embed_dim          # lm_embedding_type=None
    N = 300
    F = num_cat + add_dim

    keys = jax.random.split(key, num_cat + 4)

    # Embedding tables (xavier-uniform), zero-padded to a common pow2 vocab size.
    vpad = int(pl.next_power_of_2(max(8, max(cat_dims))))
    tables_list, padded = [], []
    for i, d in enumerate(cat_dims):
        bound = (6.0 / (d + emb_dim)) ** 0.5
        t = jax.random.uniform(keys[i], (d, emb_dim), jnp.float32, -bound, bound)
        tables_list.append(t)
        padded.append(jnp.pad(t, ((0, vpad - d), (0, 0))))
    tables = jnp.stack(padded)                                  # (num_cat, vpad, E)

    # Linear(emb_dim + add_dim -> emb_dim), stored as [in, out] so y = x @ W + b.
    lin_in = emb_dim + add_dim
    wb = (1.0 / lin_in) ** 0.5
    w = jax.random.uniform(keys[num_cat], (lin_in, emb_dim), jnp.float32, -wb, wb)
    b = jax.random.uniform(keys[num_cat + 1], (1, emb_dim), jnp.float32, -wb, wb)

    # Inputs: categorical id columns (as floats, like the module) + continuous.
    cat_cols = []
    for i, d in enumerate(cat_dims):
        k = jax.random.fold_in(keys[num_cat + 2], i)
        cat_cols.append(jax.random.randint(k, (N, 1), 0, d).astype(jnp.float32))
    cont = jax.random.normal(keys[num_cat + 3], (N, add_dim), jnp.float32)
    x = jnp.concatenate(cat_cols + [cont], axis=1)              # (N, F)

    # Default row_block=512 collapses N=300 (75 folded rows) to a single grid step.
    out = atom_encoder(x, tables, w, b, num_cat=num_cat, add_dim=add_dim,
                       emb_dim=emb_dim)
    out = jax.block_until_ready(out)

    ref = reference_forward(x, tables_list, w, b, num_cat=num_cat, add_dim=add_dim)
    assert out.shape == (N, emb_dim)
    assert jnp.allclose(out, ref, atol=2e-5, rtol=2e-5), "mismatch vs reference"

    print("KERNEL_OK")
</pallas_src>

<mosaic_0001>
module attributes {stable_mosaic.version = 11 : i64} {
  func.func @_atom_encoder_kernel(%arg0: i32, %arg1: memref<80x36xf32, #tpu.memory_space<vmem>>, %arg2: memref<36x96xf32, #tpu.memory_space<vmem>>, %arg3: memref<1x96xf32, #tpu.memory_space<vmem>>, %arg4: memref<96x128xf32, #tpu.memory_space<vmem>>, %arg5: memref<36x128xf32, #tpu.memory_space<vmem>>, %arg6: memref<80x128xf32, #tpu.memory_space<vmem>>) attributes {dimension_semantics = [#tpu.dimension_semantics<parallel>], iteration_bounds = array<i64: 1>, scalar_prefetch = 0 : i64, scratch_operands = 0 : i64, tpu.core_type = #tpu.core_type<tc>, window_params = [{transform_indices = @transform_0, window_bounds = array<i64: 80, 36>}, {pipeline_mode = #tpu.pipeline_mode<synchronous>, transform_indices = @transform_1, window_bounds = array<i64: 36, 96>}, {pipeline_mode = #tpu.pipeline_mode<synchronous>, transform_indices = @transform_2, window_bounds = array<i64: 1, 96>}, {pipeline_mode = #tpu.pipeline_mode<synchronous>, transform_indices = @transform_3, window_bounds = array<i64: 96, 128>}, {pipeline_mode = #tpu.pipeline_mode<synchronous>, transform_indices = @transform_4, window_bounds = array<i64: 36, 128>}, {transform_indices = @transform_5, window_bounds = array<i64: 80, 128>}]} {
    %c0 = arith.constant 0 : index
    %c0_0 = arith.constant 0 : index
    %0 = vector.load %arg1[%c0, %c0_0] : memref<80x36xf32, #tpu.memory_space<vmem>>, vector<80x36xf32>
    %c0_1 = arith.constant 0 : index
    %c0_2 = arith.constant 0 : index
    %1 = vector.load %arg2[%c0_1, %c0_2] : memref<36x96xf32, #tpu.memory_space<vmem>>, vector<36x96xf32>
    %cst = arith.constant dense<0.000000e+00> : vector<80x96xf32>
    %2 = tpu.matmul %0, %1, %cst {dimension_numbers = #tpu.dot_dimension_numbers<[1], [0], [0], [1], [0, 0, 1, 1], [], []>} : vector<80x36xf32>, vector<36x96xf32>, vector<80x96xf32> -> vector<80x96xf32>
    %c0_3 = arith.constant 0 : index
    %c0_4 = arith.constant 0 : index
    %3 = vector.load %arg3[%c0_3, %c0_4] : memref<1x96xf32, #tpu.memory_space<vmem>>, vector<1x96xf32>
    %4 = vector.broadcast %3 : vector<1x96xf32> to vector<80x96xf32>
    %5 = arith.cmpf oeq, %2, %4 : vector<80x96xf32>
    %6 = arith.extui %5 : vector<80x96xi1> to vector<80x96xi32>
    %7 = arith.sitofp %6 : vector<80x96xi32> to vector<80x96xf32>
    %c0_5 = arith.constant 0 : index
    %c0_6 = arith.constant 0 : index
    %8 = vector.load %arg4[%c0_5, %c0_6] : memref<96x128xf32, #tpu.memory_space<vmem>>, vector<96x128xf32>
    %cst_7 = arith.constant dense<0.000000e+00> : vector<80x128xf32>
    %9 = tpu.matmul %7, %8, %cst_7 {dimension_numbers = #tpu.dot_dimension_numbers<[1], [0], [0], [1], [0, 0, 1, 1], [], []>} : vector<80x96xf32>, vector<96x128xf32>, vector<80x128xf32> -> vector<80x128xf32>
    %c0_8 = arith.constant 0 : index
    %c0_9 = arith.constant 0 : index
    %10 = vector.load %arg5[%c0_8, %c0_9] : memref<36x128xf32, #tpu.memory_space<vmem>>, vector<36x128xf32>
    %cst_10 = arith.constant dense<0.000000e+00> : vector<80x128xf32>
    %11 = tpu.matmul %0, %10, %cst_10 {dimension_numbers = #tpu.dot_dimension_numbers<[1], [0], [0], [1], [0, 0, 1, 1], [], []>} : vector<80x36xf32>, vector<36x128xf32>, vector<80x128xf32> -> vector<80x128xf32>
    %12 = arith.addf %9, %11 : vector<80x128xf32>
    %c0_11 = arith.constant 0 : index
    %c0_12 = arith.constant 0 : index
    %13 = vector.load %arg6[%c0_11, %c0_12] : memref<80x128xf32, #tpu.memory_space<vmem>>, vector<80x128xf32>
    tpu.vector_store %arg6[%c0_11, %c0_12], %12 {strides = array<i32>} : memref<80x128xf32, #tpu.memory_space<vmem>>, vector<80x128xf32>,
    return
  }
  func.func @transform_0(%arg0: i32) -> (i32, i32) {
    %c0_i32 = arith.constant 0 : i32
    %c0_i32_0 = arith.constant 0 : i32
    return %arg0, %c0_i32 : i32, i32
  }
  func.func @transform_1(%arg0: i32) -> (i32, i32) {
    %c0_i32 = arith.constant 0 : i32
    %c0_i32_0 = arith.constant 0 : i32
    %c0_i32_1 = arith.constant 0 : i32
    return %c0_i32, %c0_i32_0 : i32, i32
  }
  func.func @transform_2(%arg0: i32) -> (i32, i32) {
    %c0_i32 = arith.constant 0 : i32
    %c0_i32_0 = arith.constant 0 : i32
    %c0_i32_1 = arith.constant 0 : i32
    return %c0_i32, %c0_i32_0 : i32, i32
  }
  func.func @transform_3(%arg0: i32) -> (i32, i32) {
    %c0_i32 = arith.constant 0 : i32
    %c0_i32_0 = arith.constant 0 : i32
    %c0_i32_1 = arith.constant 0 : i32
    return %c0_i32, %c0_i32_0 : i32, i32
  }
  func.func @transform_4(%arg0: i32) -> (i32, i32) {
    %c0_i32 = arith.constant 0 : i32
    %c0_i32_0 = arith.constant 0 : i32
    %c0_i32_1 = arith.constant 0 : i32
    return %c0_i32, %c0_i32_0 : i32, i32
  }
  func.func @transform_5(%arg0: i32) -> (i32, i32) {
    %c0_i32 = arith.constant 0 : i32
    %c0_i32_0 = arith.constant 0 : i32
    return %arg0, %c0_i32 : i32, i32
  }
}

</mosaic_0001>

<llo_original>
// kernel: atom_encoder.1
$region0: #{atom_encoder.1}
  #allocation0 [shape = 'u32[]', space=smem, size = 0x4, offset = 0x4, fixed_abs, tag = 'smem constant byte address 0x4 - core index']
  #allocation1 [shape = 'u32[144,128]{1,0:T(1,128)}', space=vmem, size = 0x12000, scoped, tag = 'internal scratch']
  %s0 = inlined_call_operand.vmem [shape: f32[80,36], index: 0, kind: input, shape index: {}]
  %s1 = inlined_call_operand.vmem [shape: f32[36,96], index: 1, kind: input, shape index: {}]
  %s2 = inlined_call_operand.vmem [shape: f32[1,96], index: 2, kind: input, shape index: {}]
  %s3 = inlined_call_operand.vmem [shape: f32[96,128], index: 3, kind: input, shape index: {}]
  %s4 = inlined_call_operand.vmem [shape: f32[36,128], index: 4, kind: input, shape index: {}]
  %s5 = inlined_call_operand.vmem [shape: f32[80,128], index: 5, kind: output, shape index: {}]
  %s6 = sld [smem:[#allocation0]]
  $region30: #{atom_encoder.1} parent=0
    _
  %s8 = ssub.s32 1, %s6
  %s9 = scalar_select 0, %s8, %s6
  // Predicated region
  $region2: #{atom_encoder.1} parent=0 // pred_check
    _
  $region3: #{atom_encoder.1} parent=0 // pred_check_branch
    %11 = sbr.rel (0) target = $region5
  $region4: #{atom_encoder.1} parent=0 // pred_region
    _
  $region5: #{atom_encoder.1} parent=0 // pred_fallthru
    _
  // Predicated region
  $region6: #{atom_encoder.1} parent=0 // pred_check
    _
  $region7: #{atom_encoder.1} parent=0 // pred_check_branch
    %13 = sbr.rel (0) target = $region9
  $region8: #{atom_encoder.1} parent=0 // pred_region
    _
  $region9: #{atom_encoder.1} parent=0 // pred_fallthru
    _
  // Predicated region
  $region10: #{atom_encoder.1} parent=0 // pred_check
    _
  $region11: #{atom_encoder.1} parent=0 // pred_check_branch
    %15 = sbr.rel (0) target = $region13
  $region12: #{atom_encoder.1} parent=0 // pred_region
    _
  $region13: #{atom_encoder.1} parent=0 // pred_fallthru
    _
  // Predicated region
  $region14: #{atom_encoder.1} parent=0 // pred_check
    _
  $region15: #{atom_encoder.1} parent=0 // pred_check_branch
    %17 = sbr.rel (0) target = $region17
  $region16: #{atom_encoder.1} parent=0 // pred_region
    _
  $region17: #{atom_encoder.1} parent=0 // pred_fallthru
    _
  // Predicated region
  $region18: #{atom_encoder.1} parent=0 // pred_check
    _
  $region19: #{atom_encoder.1} parent=0 // pred_check_branch
    %19 = sbr.rel (0) target = $region21
  $region20: #{atom_encoder.1} parent=0 // pred_region
    _
  $region21: #{atom_encoder.1} parent=0 // pred_fallthru
    _
  %v20 = vld [vmem:[%s0] sm:$0xff]
  %v21 = vld [vmem:[%s0 + $0x8] sm:$0xff]
  %v22 = vld [vmem:[%s0 + $0x10] sm:$0xff]
  %v23 = vld [vmem:[%s0 + $0x18] sm:$0xff]
  %v24 = vld [vmem:[%s0 + $0x20] sm:$0xff]
  %v25 = vld [vmem:[%s0 + $0x28] sm:$0xff]
  %v26 = vld [vmem:[%s0 + $0x30] sm:$0xff]
  %v27 = vld [vmem:[%s0 + $0x38] sm:$0xff]
  %v28 = vld [vmem:[%s0 + $0x40] sm:$0xff]
  %v29 = vld [vmem:[%s0 + $0x48] sm:$0xff]
  %v30 = vld [vmem:[%s1] sm:$0xff]
  %v31 = vld [vmem:[%s1 + $0x8] sm:$0xff]
  %v32 = vld [vmem:[%s1 + $0x10] sm:$0xff]
  %v33 = vld [vmem:[%s1 + $0x18] sm:$0xff]
  %v34 = vld [vmem:[%s1 + $0x20] sm:$0xf]
  %vm35 = vcmask 293888
  %v37 = vsel %vm35, %v20, 0
  %v40 = vsel %vm35, %v21, 0
  %v43 = vsel %vm35, %v22, 0
  %v46 = vsel %vm35, %v23, 0
  %v49 = vsel %vm35, %v24, 0
  %v52 = vsel %vm35, %v25, 0
  %v55 = vsel %vm35, %v26, 0
  %v58 = vsel %vm35, %v27, 0
  %v61 = vsel %vm35, %v28, 0
  %v64 = vsel %vm35, %v29, 0
  %vm66 = vcmask 1043456
  %v68 = vsel %vm66, %v34, 0
  %70 = vmatprep.subr.mxu0 0.0
  %71 = vmatpush1.msra.mxu0 %v30
  %72 = vmatprep.subr.mxu0 0.0
  %73 = vmatpush1.msra.mxu0 %v31
  %74 = vmatprep.subr.mxu0 0.0
  %75 = vmatpush1.msra.mxu0 %v32
  %76 = vmatprep.subr.mxu0 0.0
  %77 = vmatpush1.msra.mxu0 %v33
  %78 = vmatprep.subr.mxu0 0.0
  %79 = vmatpush1.msra.mxu0 %v68
  %80 = vmatprep.subr.mxu0 0.0
  %81 = vmatpush1.msra.mxu0 0.0
  %82 = vmatprep.subr.mxu0 0.0
  %83 = vmatpush1.msra.mxu0 0.0
  %84 = vmatprep.subr.mxu0 0.0
  %85 = vmatpush1.msra.mxu0 0.0
  %86 = vmatprep.subr.mxu0 0.0
  %87 = vmatpush1.msra.mxu0 0.0
  %88 = vmatprep.subr.mxu0 0.0
  %89 = vmatpush1.msra.mxu0 0.0
  %90 = vmatprep.subr.mxu0 0.0
  %91 = vmatpush1.msra.mxu0 0.0
  %92 = vmatprep.subr.mxu0 0.0
  %93 = vmatpush1.msra.mxu0 0.0
  %94 = vmatprep.subr.mxu0 0.0
  %95 = vmatpush1.msra.mxu0 0.0
  %96 = vmatprep.subr.mxu0 0.0
  %97 = vmatpush1.msra.mxu0 0.0
  %98 = vmatprep.subr.mxu0 0.0
  %99 = vmatpush1.msra.mxu0 0.0
  %100 = vmatprep.subr.mxu0 0.0
  %101 = vmatpush1.msra.mxu0 0.0
  %102 = vmatprep.subr.mxu0 0.0
  %103 = vmatpush1.msra.mxu0 0.0
  %104 = vmatprep.subr.mxu0 0.0
  %105 = vmatpush1.msra.mxu0 0.0
  %106 = vmatprep.subr.mxu0 0.0
  %107 = vmatpush1.msra.mxu0 0.0
  %108 = vmatprep.subr.mxu0 0.0
  %109 = vmatpush1.msra.mxu0 0.0
  %110 = vmatprep.subr.mxu0 0.0
  %111 = vmatpush1.msra.mxu0 0.0
  %112 = vmatprep.subr.mxu0 0.0
  %113 = vmatpush1.msra.mxu0 0.0
  %114 = vmatprep.subr.mxu0 0.0
  %115 = vmatpush1.msra.mxu0 0.0
  %116 = vmatprep.subr.mxu0 0.0
  %117 = vmatpush1.msra.mxu0 0.0
  %118 = vmatprep.subr.mxu0 0.0
  %119 = vmatpush1.msra.mxu0 0.0
  %120 = vmatprep.subr.mxu0 0.0
  %121 = vmatpush1.msra.mxu0 0.0
  %122 = vmatprep.subr.mxu0 0.0
  %123 = vmatpush1.msra.mxu0 0.0
  %124 = vmatprep.subr.mxu0 0.0
  %125 = vmatpush1.msra.mxu0 0.0
  %126 = vmatprep.subr.mxu0 0.0
  %127 = vmatpush1.msra.mxu0 0.0
  %128 = vmatprep.subr.mxu0 0.0
  %129 = vmatpush1.msra.mxu0 0.0
  %130 = vmatprep.subr.mxu0 0.0
  %131 = vmatpush1.msra.mxu0 0.0
  %132 = vmatprep.subr.mxu0 0.0
  %133 = vmatpush1.msra.mxu0 0.0
  %134 = vmatprep.mubr.f32.mxu0 0.0
  %135 = vmatmul.mubr.f32.gmra.mrb[0].mxu0 %v37
  %v136 = vpop.f32.mrb[0].mxu0
  %v137 = vadd.f32 0.0, %v136
  %v138 = vpop.f32.mrb[0].mxu0
  %139 = vmatprep.mubr.f32.mxu0 0.0
  %140 = vmatmul.mubr.f32.gmra.mrb[0].mxu0 %v40
  %v141 = vpop.f32.mrb[0].mxu0
  %v142 = vadd.f32 0.0, %v141
  %v143 = vpop.f32.mrb[0].mxu0
  %144 = vmatprep.mubr.f32.mxu0 0.0
  %145 = vmatmul.mubr.f32.gmra.mrb[0].mxu0 %v43
  %v146 = vpop.f32.mrb[0].mxu0
  %v147 = vadd.f32 0.0, %v146
  %v148 = vpop.f32.mrb[0].mxu0
  %149 = vmatprep.mubr.f32.mxu0 0.0
  %150 = vmatmul.mubr.f32.gmra.mrb[0].mxu0 %v46
  %v151 = vpop.f32.mrb[0].mxu0
  %v152 = vadd.f32 0.0, %v151
  %v153 = vpop.f32.mrb[0].mxu0
  %154 = vmatprep.mubr.f32.mxu0 0.0
  %155 = vmatmul.mubr.f32.gmra.mrb[0].mxu0 %v49
  %v156 = vpop.f32.mrb[0].mxu0
  %v157 = vadd.f32 0.0, %v156
  %v158 = vpop.f32.mrb[0].mxu0
  %159 = vmatprep.mubr.f32.mxu0 0.0
  %160 = vmatmul.mubr.f32.gmra.mrb[0].mxu0 %v52
  %v161 = vpop.f32.mrb[0].mxu0
  %v162 = vadd.f32 0.0, %v161
  %v163 = vpop.f32.mrb[0].mxu0
  %164 = vmatprep.mubr.f32.mxu0 0.0
  %165 = vmatmul.mubr.f32.gmra.mrb[0].mxu0 %v55
  %v166 = vpop.f32.mrb[0].mxu0
  %v167 = vadd.f32 0.0, %v166
  %v168 = vpop.f32.mrb[0].mxu0
  %169 = vmatprep.mubr.f32.mxu0 0.0
  %170 = vmatmul.mubr.f32.gmra.mrb[0].mxu0 %v58
  %v171 = vpop.f32.mrb[0].mxu0
  %v172 = vadd.f32 0.0, %v171
  %v173 = vpop.f32.mrb[0].mxu0
  %174 = vmatprep.mubr.f32.mxu0 0.0
  %175 = vmatmul.mubr.f32.gmra.mrb[0].mxu0 %v61
  %v176 = vpop.f32.mrb[0].mxu0
  %v177 = vadd.f32 0.0, %v176
  %v178 = vpop.f32.mrb[0].mxu0
  %179 = vmatprep.mubr.f32.mxu0 0.0
  %180 = vmatmul.mubr.f32.gmra.mrb[0].mxu0 %v64
  %v181 = vpop.f32.mrb[0].mxu0
  %v182 = vadd.f32 0.0, %v181
  %v183 = vpop.f32.mrb[0].mxu0
  %184 = vdwg.mxu0
  %v185 = vld [vmem:[%s2] sm:$0x1]
  %v187 = vlaneseq
  %v188 = vshrl.u32 %v187, 7
  %v189 = vsub.s32 0, %v188
  %v190 = vrot.slane %v185, %v189
  %vm192 = vcmp.eq.f32.partialorder %v137, %v190
  %vm193 = vcmp.eq.f32.partialorder %v142, %v190
  %vm194 = vcmp.eq.f32.partialorder %v147, %v190
  %vm195 = vcmp.eq.f32.partialorder %v152, %v190
  %vm196 = vcmp.eq.f32.partialorder %v157, %v190
  %vm197 = vcmp.eq.f32.partialorder %v162, %v190
  %vm198 = vcmp.eq.f32.partialorder %v167, %v190
  %vm199 = vcmp.eq.f32.partialorder %v172, %v190
  %vm200 = vcmp.eq.f32.partialorder %v177, %v190
  %vm201 = vcmp.eq.f32.partialorder %v182, %v190
  %v202 = vsel %vm192, 1, 0
  %v203 = vsel %vm193, 1, 0
  %v204 = vsel %vm194, 1, 0
  %v205 = vsel %vm195, 1, 0
  %v206 = vsel %vm196, 1, 0
  %v207 = vsel %vm197, 1, 0
  %v208 = vsel %vm198, 1, 0
  %v209 = vsel %vm199, 1, 0
  %v210 = vsel %vm200, 1, 0
  %v211 = vsel %vm201, 1, 0
  %v212 = vcvt.s32.f32 %v202
  %v213 = vcvt.s32.f32 %v203
  %v214 = vcvt.s32.f32 %v204
  %v215 = vcvt.s32.f32 %v205
  %v216 = vcvt.s32.f32 %v206
  %v217 = vcvt.s32.f32 %v207
  %v218 = vcvt.s32.f32 %v208
  %v219 = vcvt.s32.f32 %v209
  %v220 = vcvt.s32.f32 %v210
  %v221 = vcvt.s32.f32 %v211
  %v222 = vld [vmem:[%s3] sm:$0xff]
  %v223 = vld [vmem:[%s3 + $0x8] sm:$0xff]
  %v224 = vld [vmem:[%s3 + $0x10] sm:$0xff]
  %v225 = vld [vmem:[%s3 + $0x18] sm:$0xff]
  %v226 = vld [vmem:[%s3 + $0x20] sm:$0xff]
  %v227 = vld [vmem:[%s3 + $0x28] sm:$0xff]
  %v228 = vld [vmem:[%s3 + $0x30] sm:$0xff]
  %v229 = vld [vmem:[%s3 + $0x38] sm:$0xff]
  %v230 = vld [vmem:[%s3 + $0x40] sm:$0xff]
  %v231 = vld [vmem:[%s3 + $0x48] sm:$0xff]
  %v232 = vld [vmem:[%s3 + $0x50] sm:$0xff]
  %v233 = vld [vmem:[%s3 + $0x58] sm:$0xff]
  %v234 = vld [vmem:[%s4] sm:$0xff]
  %v235 = vld [vmem:[%s4 + $0x8] sm:$0xff]
  %v236 = vld [vmem:[%s4 + $0x10] sm:$0xff]
  %v237 = vld [vmem:[%s4 + $0x18] sm:$0xff]
  %v238 = vld [vmem:[%s4 + $0x20] sm:$0xf]
  %v240 = vsel %vm66, %v238, 0
  %242 = vmatprep.subr.mxu0 0.0
  %243 = vmatpush1.msra.mxu0 %v234
  %244 = vmatprep.subr.mxu0 0.0
  %245 = vmatpush1.msra.mxu0 %v235
  %246 = vmatprep.subr.mxu0 0.0
  %247 = vmatpush1.msra.mxu0 %v236
  %248 = vmatprep.subr.mxu0 0.0
  %249 = vmatpush1.msra.mxu0 %v237
  %250 = vmatprep.subr.mxu0 0.0
  %251 = vmatpush1.msra.mxu0 %v240
  %252 = vmatprep.subr.mxu0 0.0
  %253 = vmatpush1.msra.mxu0 0.0
  %254 = vmatprep.subr.mxu0 0.0
  %255 = vmatpush1.msra.mxu0 0.0
  %256 = vmatprep.subr.mxu0 0.0
  %257 = vmatpush1.msra.mxu0 0.0
  %258 = vmatprep.subr.mxu0 0.0
  %259 = vmatpush1.msra.mxu0 0.0
  %260 = vmatprep.subr.mxu0 0.0
  %261 = vmatpush1.msra.mxu0 0.0
  %262 = vmatprep.subr.mxu0 0.0
  %263 = vmatpush1.msra.mxu0 0.0
  %264 = vmatprep.subr.mxu0 0.0
  %265 = vmatpush1.msra.mxu0 0.0
  %266 = vmatprep.subr.mxu0 0.0
  %267 = vmatpush1.msra.mxu0 0.0
  %268 = vmatprep.subr.mxu0 0.0
  %269 = vmatpush1.msra.mxu0 0.0
  %270 = vmatprep.subr.mxu0 0.0
  %271 = vmatpush1.msra.mxu0 0.0
  %272 = vmatprep.subr.mxu0 0.0
  %273 = vmatpush1.msra.mxu0 0.0
  %274 = vmatprep.subr.mxu0 0.0
  %275 = vmatpush1.msra.mxu0 0.0
  %276 = vmatprep.subr.mxu0 0.0
  %277 = vmatpush1.msra.mxu0 0.0
  %278 = vmatprep.subr.mxu0 0.0
  %279 = vmatpush1.msra.mxu0 0.0
  %280 = vmatprep.subr.mxu0 0.0
  %281 = vmatpush1.msra.mxu0 0.0
  %282 = vmatprep.subr.mxu0 0.0
  %283 = vmatpush1.msra.mxu0 0.0
  %284 = vmatprep.subr.mxu0 0.0
  %285 = vmatpush1.msra.mxu0 0.0
  %286 = vmatprep.subr.mxu0 0.0
  %287 = vmatpush1.msra.mxu0 0.0
  %288 = vmatprep.subr.mxu0 0.0
  %289 = vmatpush1.msra.mxu0 0.0
  %290 = vmatprep.subr.mxu0 0.0
  %291 = vmatpush1.msra.mxu0 0.0
  %292 = vmatprep.subr.mxu0 0.0
  %293 = vmatpush1.msra.mxu0 0.0
  %294 = vmatprep.subr.mxu0 0.0
  %295 = vmatpush1.msra.mxu0 0.0
  %296 = vmatprep.subr.mxu0 0.0
  %297 = vmatpush1.msra.mxu0 0.0
  %298 = vmatprep.subr.mxu0 0.0
  %299 = vmatpush1.msra.mxu0 0.0
  %300 = vmatprep.subr.mxu0 0.0
  %301 = vmatpush1.msra.mxu0 0.0
  %302 = vmatprep.subr.mxu0 0.0
  %303 = vmatpush1.msra.mxu0 0.0
  %304 = vmatprep.subr.mxu0 0.0
  %305 = vmatpush1.msra.mxu0 0.0
  %306 = vmatprep.mubr.f32.mxu0 0.0
  %307 = vmatmul.mubr.f32.gmra.mrb[0].mxu0 %v37
  %v308 = vpop.f32.mrb[0].mxu0
  %v309 = vadd.f32 0.0, %v308
  %v310 = vpop.f32.mrb[0].mxu0
  %311 = vmatprep.mubr.f32.mxu0 0.0
  %312 = vmatmul.mubr.f32.gmra.mrb[0].mxu0 %v40
  %v313 = vpop.f32.mrb[0].mxu0
  %v314 = vadd.f32 0.0, %v313
  %v315 = vpop.f32.mrb[0].mxu0
  %316 = vmatprep.mubr.f32.mxu0 0.0
  %317 = vmatmul.mubr.f32.gmra.mrb[0].mxu0 %v43
  %v318 = vpop.f32.mrb[0].mxu0
  %v319 = vadd.f32 0.0, %v318
  %v320 = vpop.f32.mrb[0].mxu0
  %321 = vmatprep.mubr.f32.mxu0 0.0
  %322 = vmatmul.mubr.f32.gmra.mrb[0].mxu0 %v46
  %v323 = vpop.f32.mrb[0].mxu0
  %v324 = vadd.f32 0.0, %v323
  %v325 = vpop.f32.mrb[0].mxu0
  %326 = vmatprep.mubr.f32.mxu0 0.0
  %327 = vmatmul.mubr.f32.gmra.mrb[0].mxu0 %v49
  %v328 = vpop.f32.mrb[0].mxu0
  %v329 = vadd.f32 0.0, %v328
  %v330 = vpop.f32.mrb[0].mxu0
  %331 = vmatprep.mubr.f32.mxu0 0.0
  %332 = vmatmul.mubr.f32.gmra.mrb[0].mxu0 %v52
  %v333 = vpop.f32.mrb[0].mxu0
  %v334 = vadd.f32 0.0, %v333
  %v335 = vpop.f32.mrb[0].mxu0
  %336 = vmatprep.mubr.f32.mxu0 0.0
  %337 = vmatmul.mubr.f32.gmra.mrb[0].mxu0 %v55
  %v338 = vpop.f32.mrb[0].mxu0
  %v339 = vadd.f32 0.0, %v338
  %v340 = vpop.f32.mrb[0].mxu0
  %341 = vmatprep.mubr.f32.mxu0 0.0
  %342 = vmatmul.mubr.f32.gmra.mrb[0].mxu0 %v58
  %v343 = vpop.f32.mrb[0].mxu0
  %v344 = vadd.f32 0.0, %v343
  %v345 = vpop.f32.mrb[0].mxu0
  %346 = vmatprep.mubr.f32.mxu0 0.0
  %347 = vmatmul.mubr.f32.gmra.mrb[0].mxu0 %v61
  %v348 = vpop.f32.mrb[0].mxu0
  %v349 = vadd.f32 0.0, %v348
  %v350 = vpop.f32.mrb[0].mxu0
  %351 = vmatprep.mubr.f32.mxu0 0.0
  %352 = vmatmul.mubr.f32.gmra.mrb[0].mxu0 %v64
  %v353 = vpop.f32.mrb[0].mxu0
  %v354 = vadd.f32 0.0, %v353
  %v355 = vpop.f32.mrb[0].mxu0
  %356 = vdwg.mxu0
  %vm357 = vcmask 785408
  %v359 = vsel %vm357, %v212, 0
  %v362 = vsel %vm357, %v213, 0
  %v365 = vsel %vm357, %v214, 0
  %v368 = vsel %vm357, %v215, 0
  %v371 = vsel %vm357, %v216, 0
  %v374 = vsel %vm357, %v217, 0
  %v377 = vsel %vm357, %v218, 0
  %v380 = vsel %vm357, %v219, 0
  %v383 = vsel %vm357, %v220, 0
  %v386 = vsel %vm357, %v221, 0
  %388 = vmatprep.subr.mxu0 0.0
  %389 = vmatpush1.msra.mxu0 %v222
  %390 = vmatprep.subr.mxu0 0.0
  %391 = vmatpush1.msra.mxu0 %v223
  %392 = vmatprep.subr.mxu0 0.0
  %393 = vmatpush1.msra.mxu0 %v224
  %394 = vmatprep.subr.mxu0 0.0
  %395 = vmatpush1.msra.mxu0 %v225
  %396 = vmatprep.subr.mxu0 0.0
  %397 = vmatpush1.msra.mxu0 %v226
  %398 = vmatprep.subr.mxu0 0.0
  %399 = vmatpush1.msra.mxu0 %v227
  %400 = vmatprep.subr.mxu0 0.0
  %401 = vmatpush1.msra.mxu0 %v228
  %402 = vmatprep.subr.mxu0 0.0
  %403 = vmatpush1.msra.mxu0 %v229
  %404 = vmatprep.subr.mxu0 0.0
  %405 = vmatpush1.msra.mxu0 %v230
  %406 = vmatprep.subr.mxu0 0.0
  %407 = vmatpush1.msra.mxu0 %v231
  %408 = vmatprep.subr.mxu0 0.0
  %409 = vmatpush1.msra.mxu0 %v232
  %410 = vmatprep.subr.mxu0 0.0
  %411 = vmatpush1.msra.mxu0 %v233
  %412 = vmatprep.subr.mxu0 0.0
  %413 = vmatpush1.msra.mxu0 0.0
  %414 = vmatprep.subr.mxu0 0.0
  %415 = vmatpush1.msra.mxu0 0.0
  %416 = vmatprep.subr.mxu0 0.0
  %417 = vmatpush1.msra.mxu0 0.0
  %418 = vmatprep.subr.mxu0 0.0
  %419 = vmatpush1.msra.mxu0 0.0
  %420 = vmatprep.subr.mxu0 0.0
  %421 = vmatpush1.msra.mxu0 0.0
  %422 = vmatprep.subr.mxu0 0.0
  %423 = vmatpush1.msra.mxu0 0.0
  %424 = vmatprep.subr.mxu0 0.0
  %425 = vmatpush1.msra.mxu0 0.0
  %426 = vmatprep.subr.mxu0 0.0
  %427 = vmatpush1.msra.mxu0 0.0
  %428 = vmatprep.subr.mxu0 0.0
  %429 = vmatpush1.msra.mxu0 0.0
  %430 = vmatprep.subr.mxu0 0.0
  %431 = vmatpush1.msra.mxu0 0.0
  %432 = vmatprep.subr.mxu0 0.0
  %433 = vmatpush1.msra.mxu0 0.0
  %434 = vmatprep.subr.mxu0 0.0
  %435 = vmatpush1.msra.mxu0 0.0
  %436 = vmatprep.subr.mxu0 0.0
  %437 = vmatpush1.msra.mxu0 0.0
  %438 = vmatprep.subr.mxu0 0.0
  %439 = vmatpush1.msra.mxu0 0.0
  %440 = vmatprep.subr.mxu0 0.0
  %441 = vmatpush1.msra.mxu0 0.0
  %442 = vmatprep.subr.mxu0 0.0
  %443 = vmatpush1.msra.mxu0 0.0
  %444 = vmatprep.subr.mxu0 0.0
  %445 = vmatpush1.msra.mxu0 0.0
  %446 = vmatprep.subr.mxu0 0.0
  %447 = vmatpush1.msra.mxu0 0.0
  %448 = vmatprep.subr.mxu0 0.0
  %449 = vmatpush1.msra.mxu0 0.0
  %450 = vmatprep.subr.mxu0 0.0
  %451 = vmatpush1.msra.mxu0 0.0
  %452 = vmatprep.mubr.f32.mxu0 0.0
  %453 = vmatmul.mubr.f32.gmra.mrb[0].mxu0 %v359
  %v454 = vpop.f32.mrb[0].mxu0
  %v455 = vadd.f32 %v309, %v454
  %v456 = vpop.f32.mrb[0].mxu0
  %457 = vmatprep.mubr.f32.mxu0 0.0
  %458 = vmatmul.mubr.f32.gmra.mrb[0].mxu0 %v362
  %v459 = vpop.f32.mrb[0].mxu0
  %v460 = vadd.f32 %v314, %v459
  %v461 = vpop.f32.mrb[0].mxu0
  %462 = vmatprep.mubr.f32.mxu0 0.0
  %463 = vmatmul.mubr.f32.gmra.mrb[0].mxu0 %v365
  %v464 = vpop.f32.mrb[0].mxu0
  %v465 = vadd.f32 %v319, %v464
  %v466 = vpop.f32.mrb[0].mxu0
  %467 = vmatprep.mubr.f32.mxu0 0.0
  %468 = vmatmul.mubr.f32.gmra.mrb[0].mxu0 %v368
  %v469 = vpop.f32.mrb[0].mxu0
  %v470 = vadd.f32 %v324, %v469
  %v471 = vpop.f32.mrb[0].mxu0
  %472 = vmatprep.mubr.f32.mxu0 0.0
  %473 = vmatmul.mubr.f32.gmra.mrb[0].mxu0 %v371
  %v474 = vpop.f32.mrb[0].mxu0
  %v475 = vadd.f32 %v329, %v474
  %v476 = vpop.f32.mrb[0].mxu0
  %477 = vmatprep.mubr.f32.mxu0 0.0
  %478 = vmatmul.mubr.f32.gmra.mrb[0].mxu0 %v374
  %v479 = vpop.f32.mrb[0].mxu0
  %v480 = vadd.f32 %v334, %v479
  %v481 = vpop.f32.mrb[0].mxu0
  %482 = vmatprep.mubr.f32.mxu0 0.0
  %483 = vmatmul.mubr.f32.gmra.mrb[0].mxu0 %v377
  %v484 = vpop.f32.mrb[0].mxu0
  %v485 = vadd.f32 %v339, %v484
  %v486 = vpop.f32.mrb[0].mxu0
  %487 = vmatprep.mubr.f32.mxu0 0.0
  %488 = vmatmul.mubr.f32.gmra.mrb[0].mxu0 %v380
  %v489 = vpop.f32.mrb[0].mxu0
  %v490 = vadd.f32 %v344, %v489
  %v491 = vpop.f32.mrb[0].mxu0
  %492 = vmatprep.mubr.f32.mxu0 0.0
  %493 = vmatmul.mubr.f32.gmra.mrb[0].mxu0 %v383
  %v494 = vpop.f32.mrb[0].mxu0
  %v495 = vadd.f32 %v349, %v494
  %v496 = vpop.f32.mrb[0].mxu0
  %497 = vmatprep.mubr.f32.mxu0 0.0
  %498 = vmatmul.mubr.f32.gmra.mrb[0].mxu0 %v386
  %v499 = vpop.f32.mrb[0].mxu0
  %v500 = vadd.f32 %v354, %v499
  %v501 = vpop.f32.mrb[0].mxu0
  %502 = vdwg.mxu0
  %503 = vst [vmem:[%s5] sm:$0xff] %v455
  %504 = vst [vmem:[%s5 + $0x8] sm:$0xff] %v460
  %505 = vst [vmem:[%s5 + $0x10] sm:$0xff] %v465
  %506 = vst [vmem:[%s5 + $0x18] sm:$0xff] %v470
  %507 = vst [vmem:[%s5 + $0x20] sm:$0xff] %v475
  %508 = vst [vmem:[%s5 + $0x28] sm:$0xff] %v480
  %509 = vst [vmem:[%s5 + $0x30] sm:$0xff] %v485
  %510 = vst [vmem:[%s5 + $0x38] sm:$0xff] %v490
  %511 = vst [vmem:[%s5 + $0x40] sm:$0xff] %v495
  %512 = vst [vmem:[%s5 + $0x48] sm:$0xff] %v500
  // Predicated region
  $region22: #{atom_encoder.1} parent=0 // pred_check
    _
  $region23: #{atom_encoder.1} parent=0 // pred_check_branch
    %514 = sbr.rel (0) target = $region25
  $region24: #{atom_encoder.1} parent=0 // pred_region
    _
  $region25: #{atom_encoder.1} parent=0 // pred_fallthru
    _
  // Predicated region
  $region26: #{atom_encoder.1} parent=0 // pred_check
    _
  $region27: #{atom_encoder.1} parent=0 // pred_check_branch
    %516 = sbr.rel (0) target = $region29
  $region28: #{atom_encoder.1} parent=0 // pred_region
    _
  $region29: #{atom_encoder.1} parent=0 // pred_fallthru
    _

</llo_original>
